<compile_context>
chip_gen: v7x
topology: tpu7x:2x2x1
jax: 0.10.0
libtpu: 0.0.40
codegen_flags: <defaults>
</compile_context>

<pallas_src>
import functools

import jax
import jax.numpy as jnp
from jax import lax
from jax.experimental import pallas as pl
from jax.experimental.pallas import tpu as pltpu

LANE_WIDTH = 1024          # slab width; multiple of 128 -> unmasked lane-dense stores
CHUNK_ROWS = 8             # per-chunk rows: (8, 1024) f32 == 8 vregs
MAX_TILE_ROWS = 512        # 512 x 1024 x f32 = 2 MiB per operand per grid step
VMEM_LIMIT_BYTES = 32 * 1024 * 1024


def _loss_expr(p, t, *, beta, inv_beta, half_beta):
    d = p.astype(jnp.float32) - t.astype(jnp.float32)
    diff = jnp.abs(jnp.sin(d))
    return jnp.where(diff < beta, diff * diff * inv_beta, diff - half_beta)


def _accum_rows(p_ref, t_ref, acc_ref, n_rows, kw):
    """Accumulate loss over rows [0, n_rows) of the current block into acc_ref."""
    full = n_rows // CHUNK_ROWS
    rem = n_rows % CHUNK_ROWS

    def one_chunk(r0, nr):
        return _loss_expr(p_ref[pl.ds(r0, nr), :], t_ref[pl.ds(r0, nr), :], **kw)

    if 0 < full <= 4:
        # Few chunks: static straight-line code, static slices.
        for c in range(full):
            acc_ref[...] += one_chunk(c * CHUNK_ROWS, CHUNK_ROWS)
    elif full > 4:
        def body(c, carry):
            r0 = pl.multiple_of(c * CHUNK_ROWS, CHUNK_ROWS)
            acc_ref[...] += one_chunk(r0, CHUNK_ROWS)
            return carry
        lax.fori_loop(0, full, body, 0, unroll=8)
    if rem:
        r0 = full * CHUNK_ROWS           # static
        acc_ref[pl.ds(0, rem), :] += one_chunk(r0, rem)


def _write_rows(p_ref, t_ref, o_ref, n_rows, kw):
    """Write elementwise loss for rows [0, n_rows) of the current block."""
    full = n_rows // CHUNK_ROWS
    rem = n_rows % CHUNK_ROWS

    def one_chunk(r0, nr):
        return _loss_expr(p_ref[pl.ds(r0, nr), :], t_ref[pl.ds(r0, nr), :],
                          **kw).astype(o_ref.dtype)

    if 0 < full <= 4:
        for c in range(full):
            o_ref[pl.ds(c * CHUNK_ROWS, CHUNK_ROWS), :] = one_chunk(
                c * CHUNK_ROWS, CHUNK_ROWS)
    elif full > 4:
        def body(c, carry):
            r0 = pl.multiple_of(c * CHUNK_ROWS, CHUNK_ROWS)
            o_ref[pl.ds(r0, CHUNK_ROWS), :] = one_chunk(r0, CHUNK_ROWS)
            return carry
        lax.fori_loop(0, full, body, 0, unroll=8)
    if rem:
        r0 = full * CHUNK_ROWS
        o_ref[pl.ds(r0, rem), :] = one_chunk(r0, rem)


# ---------------- reduction kernel ('mean' / 'sum') ----------------
def _reduce_kernel(p_ref, t_ref, o_ref, acc_ref, *, beta, inv_beta, half_beta,
                   last_block_rows):
    kw = dict(beta=beta, inv_beta=inv_beta, half_beta=half_beta)
    step = pl.program_id(0)
    last = pl.num_programs(0) - 1
    tile_rows = p_ref.shape[0]

    @pl.when(step == 0)
    def _():
        acc_ref[...] = jnp.zeros_like(acc_ref)

    if last_block_rows == tile_rows:
        # Every block is fully valid (lane-tail padding is zero -> loss(0,0)=0,
        # so it contributes exactly nothing; the zero pad value is load-bearing).
        _accum_rows(p_ref, t_ref, acc_ref, tile_rows, kw)
    else:
        @pl.when(step != last)
        def _():
            _accum_rows(p_ref, t_ref, acc_ref, tile_rows, kw)

        @pl.when(step == last)
        def _():
            # Overhang rows of the last block are never read -> no masking needed.
            _accum_rows(p_ref, t_ref, acc_ref, last_block_rows, kw)

    @pl.when(step == last)
    def _():
        o_ref[...] = jnp.sum(acc_ref[...])[None, None]


# ---------------- elementwise kernel ('none') ----------------
def _elemwise_kernel(p_ref, t_ref, o_ref, *, beta, inv_beta, half_beta):
    kw = dict(beta=beta, inv_beta=inv_beta, half_beta=half_beta)
    # Compute every row of the block; Pallas drops the HBM writeback of any
    # rows that overhang the output array.
    _write_rows(p_ref, t_ref, o_ref, p_ref.shape[0], kw)


def _flatten_lane_slab(x):
    """Flatten row-major to a (rows, LANE_WIDTH) slab in the *native* dtype.

    Lane-aligned sizes are a zero-copy reshape.  Lane-unaligned sizes pay one
    tail zero-pad (the zero value is load-bearing for the reduce path).
    """
    n = x.size
    flat = x.reshape(-1)
    rem = n % LANE_WIDTH
    if rem:
        # TODO(synk): this still copies the whole array for lane-unaligned
        # sizes; a ragged-tail second pallas_call would avoid it.
        flat = jnp.pad(flat, (0, LANE_WIDTH - rem))
    return flat.reshape(-1, LANE_WIDTH)


def sine_smooth_l1_loss(pred, target, *, beta=1.0, reduction="mean"):
    assert beta > 0
    assert pred.shape == target.shape, (pred.shape, target.shape)
    n = int(pred.size)
    assert n > 0
    if reduction not in ("none", "mean", "sum"):
        raise ValueError(f"unsupported reduction: {reduction!r}")

    beta = float(beta)
    kern_kwargs = dict(beta=beta, inv_beta=0.5 / beta, half_beta=0.5 * beta)

    p_slab = _flatten_lane_slab(pred)
    t_slab = _flatten_lane_slab(target)
    rows = p_slab.shape[0]

    # Full-extent block for small inputs (always legal), 512-row tiles otherwise.
    tile_rows = rows if rows <= MAX_TILE_ROWS else MAX_TILE_ROWS
    steps = pl.cdiv(rows, tile_rows)
    last_block_rows = rows - (steps - 1) * tile_rows   # in (0, tile_rows]

    in_spec = pl.BlockSpec((tile_rows, LANE_WIDTH), lambda i: (i, 0))
    in_bytes = n * (pred.dtype.itemsize + target.dtype.itemsize)

    if reduction == "none":
        out = pl.pallas_call(
            functools.partial(_elemwise_kernel, **kern_kwargs),
            out_shape=jax.ShapeDtypeStruct((rows, LANE_WIDTH), pred.dtype),
            grid=(steps,),
            in_specs=[in_spec, in_spec],
            out_specs=pl.BlockSpec((tile_rows, LANE_WIDTH), lambda i: (i, 0)),
            compiler_params=pltpu.CompilerParams(
                dimension_semantics=("parallel",),
                vmem_limit_bytes=VMEM_LIMIT_BYTES),
            cost_estimate=pl.CostEstimate(
                flops=12 * n, transcendentals=n,
                bytes_accessed=in_bytes + n * pred.dtype.itemsize),
        )(p_slab, t_slab)
        flat = out.reshape(-1)
        if flat.shape[0] != n:
            flat = flat[:n]
        return flat.reshape(pred.shape)

    # 'mean' / 'sum': serial reduction grid with a persistent (8, 1024) f32
    # accumulator in VMEM scratch; single cross-lane reduce in the last step.
    out = pl.pallas_call(
        functools.partial(_reduce_kernel, last_block_rows=last_block_rows,
                          **kern_kwargs),
        out_shape=jax.ShapeDtypeStruct((1, 1), jnp.float32),
        grid=(steps,),
        in_specs=[in_spec, in_spec],
        out_specs=pl.BlockSpec((1, 1), lambda i: (0, 0)),
        scratch_shapes=[pltpu.VMEM((CHUNK_ROWS, LANE_WIDTH), jnp.float32)],
        compiler_params=pltpu.CompilerParams(
            dimension_semantics=("arbitrary",),
            vmem_limit_bytes=VMEM_LIMIT_BYTES),
        cost_estimate=pl.CostEstimate(
            flops=12 * n, transcendentals=n, bytes_accessed=in_bytes + 4),
    )(p_slab, t_slab)

    total = out[0, 0]
    if reduction == "mean":
        total = total / jnp.float32(n)
    return total


class SineSmoothL1Loss:
    """JAX/Pallas port of second.model.losses.sine.SineSmoothL1Loss."""
    # TODO(synk): the upstream @weighted_loss decorator also accepts optional
    # per-element `weight` / `avg_factor` kwargs; only the default
    # (unweighted) path is implemented here.

    def __init__(self, reduction="mean", beta=1.0):
        self.reduction = reduction
        self.beta = beta

    def __call__(self, pred, target):
        return sine_smooth_l1_loss(pred, target, beta=self.beta,
                                   reduction=self.reduction)


if __name__ == "__main__":
    key = jax.random.PRNGKey(0)
    k1, k2, k3, k4, k5, k6 = jax.random.split(key, 6)

    def ref_loss(p, t, beta=1.0):
        diff = jnp.abs(jnp.sin(p.astype(jnp.float32) - t.astype(jnp.float32)))
        return jnp.where(diff < beta, 0.5 * diff * diff / beta, diff - 0.5 * beta)

    # 1) NCHW inputs, as the PyTorch module would receive (lane-aligned size).
    pred = jax.random.normal(k1, (2, 4, 16, 16), dtype=jnp.float32)
    target = jax.random.normal(k2, (2, 4, 16, 16), dtype=jnp.float32)
    ref = ref_loss(pred, target)

    loss_mean = SineSmoothL1Loss(reduction="mean", beta=1.0)(pred, target)
    jax.block_until_ready(loss_mean)
    assert jnp.allclose(loss_mean, jnp.mean(ref), rtol=1e-5, atol=1e-6), (
        loss_mean, jnp.mean(ref))

    loss_none = SineSmoothL1Loss(reduction="none")(pred, target)
    jax.block_until_ready(loss_none)
    assert loss_none.shape == pred.shape and loss_none.dtype == pred.dtype
    assert jnp.allclose(loss_none, ref, rtol=1e-5, atol=1e-6)

    loss_sum = SineSmoothL1Loss(reduction="sum")(pred, target)
    jax.block_until_ready(loss_sum)
    assert jnp.allclose(loss_sum, jnp.sum(ref), rtol=1e-5, atol=1e-3)

    # 2) Lane-unaligned size (exercises tail pad + partial-chunk path), beta=0.5.
    pred2 = jax.random.normal(k3, (3, 7, 11), dtype=jnp.float32)
    target2 = jax.random.normal(k4, (3, 7, 11), dtype=jnp.float32)
    ref2 = ref_loss(pred2, target2, beta=0.5)
    l2m = SineSmoothL1Loss(reduction="mean", beta=0.5)(pred2, target2)
    jax.block_until_ready(l2m)
    assert jnp.allclose(l2m, jnp.mean(ref2), rtol=1e-5, atol=1e-6), (l2m, jnp.mean(ref2))
    l2n = SineSmoothL1Loss(reduction="none", beta=0.5)(pred2, target2)
    jax.block_until_ready(l2n)
    assert l2n.shape == pred2.shape
    assert jnp.allclose(l2n, ref2, rtol=1e-5, atol=1e-6)

    # 3) Lane-aligned, multi-chunk (full chunks + remainder rows in one block).
    pred3 = jax.random.normal(k5, (2, 9, 32, 32), dtype=jnp.float32)
    target3 = jax.random.normal(k6, (2, 9, 32, 32), dtype=jnp.float32)
    ref3 = ref_loss(pred3, target3)
    l3s = SineSmoothL1Loss(reduction="sum")(pred3, target3)
    jax.block_until_ready(l3s)
    assert jnp.allclose(l3s, jnp.sum(ref3), rtol=1e-5, atol=1e-2), (l3s, jnp.sum(ref3))
    l3n = SineSmoothL1Loss(reduction="none")(pred3, target3)
    jax.block_until_ready(l3n)
    assert jnp.allclose(l3n, ref3, rtol=1e-5, atol=1e-6)

    print("KERNEL_OK")
</pallas_src>

<mosaic_0001>
module attributes {stable_mosaic.version = 11 : i64} {
  func.func @_reduce_kernel(%arg0: i32, %arg1: memref<2x1024xf32, #tpu.memory_space<vmem>>, %arg2: memref<2x1024xf32, #tpu.memory_space<vmem>>, %arg3: memref<1x1xf32, #tpu.memory_space<vmem>>, %arg4: memref<8x1024xf32, #tpu.memory_space<vmem>>) attributes {dimension_semantics = [#tpu.dimension_semantics<arbitrary>], iteration_bounds = array<i64: 1>, scalar_prefetch = 0 : i64, scratch_operands = 1 : i64, tpu.core_type = #tpu.core_type<tc>, window_params = [{transform_indices = @transform_0, window_bounds = array<i64: 2, 1024>}, {transform_indices = @transform_1, window_bounds = array<i64: 2, 1024>}, {pipeline_mode = #tpu.pipeline_mode<synchronous>, transform_indices = @transform_2, window_bounds = array<i64: 1, 1>}]} {
    %c0_i32 = arith.constant 0 : i32
    %0 = arith.cmpi eq, %arg0, %c0_i32 : i32
    %1 = arith.extui %0 : i1 to i32
    %c0_i32_0 = arith.constant 0 : i32
    %2 = arith.cmpi ne, %1, %c0_i32_0 : i32
    scf.if %2 {
      %cst_12 = arith.constant 0.000000e+00 : f32
      %22 = vector.broadcast %cst_12 : f32 to vector<8x1024xf32>
      %c0_13 = arith.constant 0 : index
      %c0_14 = arith.constant 0 : index
      %23 = vector.load %arg4[%c0_13, %c0_14] : memref<8x1024xf32, #tpu.memory_space<vmem>>, vector<8x1024xf32>
      tpu.vector_store %arg4[%c0_13, %c0_14], %22 {strides = array<i32>} : memref<8x1024xf32, #tpu.memory_space<vmem>>, vector<8x1024xf32>,
    } else {
    }
    %c0 = arith.constant 0 : index
    %c0_1 = arith.constant 0 : index
    %3 = vector.load %arg4[%c0, %c0_1] : memref<8x1024xf32, #tpu.memory_space<vmem>>, vector<2x1024xf32>
    %c0_2 = arith.constant 0 : index
    %c0_3 = arith.constant 0 : index
    %4 = vector.load %arg1[%c0_2, %c0_3] : memref<2x1024xf32, #tpu.memory_space<vmem>>, vector<2x1024xf32>
    %c0_4 = arith.constant 0 : index
    %c0_5 = arith.constant 0 : index
    %5 = vector.load %arg2[%c0_4, %c0_5] : memref<2x1024xf32, #tpu.memory_space<vmem>>, vector<2x1024xf32>
    %6 = arith.subf %4, %5 : vector<2x1024xf32>
    %7 = math.sin %6 : vector<2x1024xf32>
    %8 = math.absf %7 : vector<2x1024xf32>
    %cst = arith.constant 1.000000e+00 : f32
    %9 = vector.broadcast %cst : f32 to vector<2x1024xf32>
    %10 = arith.cmpf olt, %8, %9 : vector<2x1024xf32>
    %11 = arith.mulf %8, %8 : vector<2x1024xf32>
    %cst_6 = arith.constant 5.000000e-01 : f32
    %12 = vector.broadcast %cst_6 : f32 to vector<2x1024xf32>
    %13 = arith.mulf %11, %12 : vector<2x1024xf32>
    %cst_7 = arith.constant 5.000000e-01 : f32
    %14 = vector.broadcast %cst_7 : f32 to vector<2x1024xf32>
    %15 = arith.subf %8, %14 : vector<2x1024xf32>
    %16 = arith.select %10, %13, %15 : vector<2x1024xi1>, vector<2x1024xf32>
    %17 = arith.addf %3, %16 : vector<2x1024xf32>
    %c0_8 = arith.constant 0 : index
    %c0_9 = arith.constant 0 : index
    %18 = vector.load %arg4[%c0_8, %c0_9] : memref<8x1024xf32, #tpu.memory_space<vmem>>, vector<2x1024xf32>
    tpu.vector_store %arg4[%c0_8, %c0_9], %17 {strides = array<i32>} : memref<8x1024xf32, #tpu.memory_space<vmem>>, vector<2x1024xf32>,
    %c0_i32_10 = arith.constant 0 : i32
    %19 = arith.cmpi eq, %arg0, %c0_i32_10 : i32
    %20 = arith.extui %19 : i1 to i32
    %c0_i32_11 = arith.constant 0 : i32
    %21 = arith.cmpi ne, %20, %c0_i32_11 : i32
    scf.if %21 {
      %c0_12 = arith.constant 0 : index
      %c0_13 = arith.constant 0 : index
      %22 = vector.load %arg4[%c0_12, %c0_13] : memref<8x1024xf32, #tpu.memory_space<vmem>>, vector<8x1024xf32>
      %23 = vector.shape_cast %22 : vector<8x1024xf32> to vector<1x8x1024xf32>
      %cst_14 = arith.constant dense<0.000000e+00> : vector<1xf32>
      %24 = vector.multi_reduction <add>, %23, %cst_14 [1, 2] : vector<1x8x1024xf32> to vector<1xf32>
      %25 = vector.shape_cast %24 : vector<1xf32> to vector<1x1x1xf32>
      %26 = vector.extract %25[0, 0, 0] : f32 from vector<1x1x1xf32>
      %27 = vector.broadcast %26 : f32 to vector<1x1xf32>
      %c0_15 = arith.constant 0 : index
      %c0_16 = arith.constant 0 : index
      %28 = vector.load %arg3[%c0_15, %c0_16] : memref<1x1xf32, #tpu.memory_space<vmem>>, vector<1x1xf32>
      tpu.vector_store %arg3[%c0_15, %c0_16], %27 {strides = array<i32>} : memref<1x1xf32, #tpu.memory_space<vmem>>, vector<1x1xf32>,
    } else {
    }
    return
  }
  func.func @transform_0(%arg0: i32) -> (i32, i32) {
    %c0_i32 = arith.constant 0 : i32
    %c0_i32_0 = arith.constant 0 : i32
    return %arg0, %c0_i32 : i32, i32
  }
  func.func @transform_1(%arg0: i32) -> (i32, i32) {
    %c0_i32 = arith.constant 0 : i32
    %c0_i32_0 = arith.constant 0 : i32
    return %arg0, %c0_i32 : i32, i32
  }
  func.func @transform_2(%arg0: i32) -> (i32, i32) {
    %c0_i32 = arith.constant 0 : i32
    %c0_i32_0 = arith.constant 0 : i32
    %c0_i32_1 = arith.constant 0 : i32
    return %c0_i32, %c0_i32_0 : i32, i32
  }
}

</mosaic_0001>

<llo_original>
// kernel: tpu_custom_call.1
$region0: #{tpu_custom_call.1}
  #allocation0 [shape = 'u32[]', space=smem, size = 0x4, offset = 0x4, fixed_abs, tag = 'smem constant byte address 0x4 - core index']
  #allocation1 [shape = 'u32[144,128]{1,0:T(1,128)}', space=vmem, size = 0x12000, scoped, tag = 'internal scratch']
  #allocation2 [shape = 'f32[8,1024]{1,0:T(8,128)}', space=vmem, size = 0x8000, scoped, tag = 'scratch operand']
  %s0 = inlined_call_operand.hbm [shape: f32[2,1024], index: 0, kind: input, shape index: {}]
  %s1 = inlined_call_operand.hbm [shape: f32[2,1024], index: 1, kind: input, shape index: {}]
  %s2 = inlined_call_operand.hbm [shape: f32[1,1], index: 2, kind: output, shape index: {}]
  %s3 = sld [smem:[#allocation0]]
  $region34: #{tpu_custom_call.1} parent=0
    _
  %s5 = ssub.s32 1, %s3
  %s6 = scalar_select 0, %s5, %s3
  $region1: #{tpu_custom_call.1} parent=0
    #allocation3 [shape = 'u8[8192]{0}', space=vmem, size = 0x2000, scoped, tag = 'input window, operand 0, single buffered']
    #allocation4 [shape = 's32[1]{0}', space=sflag, size = 0x4, scoped, tag = 'scoped memory for tpu_custom_call.1']
    #allocation5 [shape = 's32[1]{0}', space=sflag, size = 0x4, scoped, tag = 'scoped memory for tpu_custom_call.1']
    #allocation6 [shape = 'u8[8192]{0}', space=vmem, size = 0x2000, scoped, tag = 'input window, operand 1, single buffered']
    #allocation7 [shape = 's32[1]{0}', space=sflag, size = 0x4, scoped, tag = 'scoped memory for tpu_custom_call.1']
    #allocation8 [shape = 'u8[512]{0}', space=vmem, size = 0x400, scoped, tag = 'output window, operand 0, single buffered']
    %7 = vsyncpa [#allocation4], 0
    %8 = vsyncpa [#allocation7], 0
    %9 = vsyncpa [#allocation5], 0
    // Predicated region
    $region2: #{tpu_custom_call.1} parent=1 // pred_check
      _
    $region3: #{tpu_custom_call.1} parent=1 // pred_check_branch
      %11 = sbr.rel (0) target = $region5
    $region4: #{tpu_custom_call.1} parent=1 // pred_region
      %s13 = ssub.s32 256, 256
      %14 = vsyncadd [#allocation4], %s13
      %s16 = sshll.u32 [#allocation3], 4
      %s17 = int_to_ptr.vmem [resolvable:$true] %s16
      %19 = dma.hbm_to_vmem [thread:$0]  %s0, 256, %s17, [#allocation4]
    $region5: #{tpu_custom_call.1} parent=1 // pred_fallthru
      _
    // Predicated region
    $region6: #{tpu_custom_call.1} parent=1 // pred_check
      _
    $region7: #{tpu_custom_call.1} parent=1 // pred_check_branch
      %21 = sbr.rel (0) target = $region9
    $region8: #{tpu_custom_call.1} parent=1 // pred_region
      %s23 = ssub.s32 256, 256
      %24 = vsyncadd [#allocation7], %s23
      %s26 = sshll.u32 [#allocation6], 4
      %s27 = int_to_ptr.vmem [resolvable:$true] %s26
      %29 = dma.hbm_to_vmem [thread:$0]  %s1, 256, %s27, [#allocation7]
    $region9: #{tpu_custom_call.1} parent=1 // pred_fallthru
      _
    // Predicated region
    $region10: #{tpu_custom_call.1} parent=1 // pred_check
      _
    $region11: #{tpu_custom_call.1} parent=1 // pred_check_branch
      %31 = sbr.rel (0) target = $region13
    $region12: #{tpu_custom_call.1} parent=1 // pred_region
      %32 = dma.done [#allocation4], 256
    $region13: #{tpu_custom_call.1} parent=1 // pred_fallthru
      _
    // Predicated region
    $region14: #{tpu_custom_call.1} parent=1 // pred_check
      _
    $region15: #{tpu_custom_call.1} parent=1 // pred_check_branch
      %34 = sbr.rel (0) target = $region17
    $region16: #{tpu_custom_call.1} parent=1 // pred_region
      %35 = dma.done [#allocation7], 256
    $region17: #{tpu_custom_call.1} parent=1 // pred_fallthru
      _
    %p36 = scmp.eq.s32.totalorder 0, 0
    // Predicated region
    $region18: #{tpu_custom_call.1} parent=1 // pred_check
      %p37 = pneg %p36
    $region19: #{tpu_custom_call.1} parent=1 // pred_check_branch
      %39 = sbr.rel (%p37) target = $region21
    $region20: #{tpu_custom_call.1} parent=1 // pred_region
      %40 = vst [vmem:[#allocation2] sm:$0xff] 0.0
      %41 = vst [vmem:[#allocation2 + $0x8] sm:$0xff] 0.0
      %42 = vst [vmem:[#allocation2 + $0x10] sm:$0xff] 0.0
      %43 = vst [vmem:[#allocation2 + $0x18] sm:$0xff] 0.0
      %44 = vst [vmem:[#allocation2 + $0x20] sm:$0xff] 0.0
      %45 = vst [vmem:[#allocation2 + $0x28] sm:$0xff] 0.0
      %46 = vst [vmem:[#allocation2 + $0x30] sm:$0xff] 0.0
      %47 = vst [vmem:[#allocation2 + $0x38] sm:$0xff] 0.0
    $region21: #{tpu_custom_call.1} parent=1 // pred_fallthru
      _
    %v48 = vld [vmem:[#allocation2] sm:$0x3]
    %v49 = vld [vmem:[#allocation2 + $0x8] sm:$0x3]
    %v50 = vld [vmem:[#allocation2 + $0x10] sm:$0x3]
    %v51 = vld [vmem:[#allocation2 + $0x18] sm:$0x3]
    %v52 = vld [vmem:[#allocation2 + $0x20] sm:$0x3]
    %v53 = vld [vmem:[#allocation2 + $0x28] sm:$0x3]
    %v54 = vld [vmem:[#allocation2 + $0x30] sm:$0x3]
    %v55 = vld [vmem:[#allocation2 + $0x38] sm:$0x3]
    %v56 = vld [vmem:[#allocation3] sm:$0xff]
    %v57 = vld [vmem:[#allocation3 + $0x8] sm:$0xff]
    %v58 = vld [vmem:[#allocation6] sm:$0xff]
    %v59 = vld [vmem:[#allocation6 + $0x8] sm:$0xff]
    %v60 = vsub.f32 %v56, %v58
    %v61 = vsub.f32 %v57, %v59
    %v62 = vand.u32 2147483647, %v60
    %vm63 = vcmp.le.f32.partialorder %v62, 0.7853982
    %vm64 = vcmp.lt.s32.totalorder %v60, 0
    %v65 = vand.u32 %v60, 2139095040
    %v66 = vshrl.u32 %v65, 23
    %v67 = vsub.s32 %v66, 127
    %v68 = vand.u32 2147483647, %v60
    %v69 = vand.u32 %v68, 8388607
    %v70 = vor.u32 %v69, 8388608
    %v71 = vsub.s32 0, %v70
    %v72 = vadd.s32 %v67, 1
    %vm73 = vcmp.gt.s32.totalorder %v72, 0
    %v74 = vsel %vm73, %v72, 0
    %v75 = vshrl.u32 %v74, 5
    %v76 = vand.u32 %v74, 31
    %v77 = vsub.s32 32, %v76
    %v78 = vshrl.u32 683565275, %v77
    %v79 = vshll.u32 683565275, %v76
    %v80 = vshrl.u32 2475754826, %v77
    %v81 = vor.u32 %v79, %v80
    %v82 = vshll.u32 2475754826, %v76
    %v83 = vshrl.u32 2131351028, %v77
    %v84 = vor.u32 %v82, %v83
    %v85 = vshll.u32 2131351028, %v76
    %v86 = vshrl.u32 2102212464, %v77
    %v87 = vor.u32 %v85, %v86
    %v88 = vshll.u32 2102212464, %v76
    %v89 = vshrl.u32 920167782, %v77
    %v90 = vor.u32 %v88, %v89
    %v91 = vshll.u32 920167782, %v76
    %v92 = vshrl.u32 1326507024, %v77
    %v93 = vor.u32 %v91, %v92
    %vm94 = vcmp.lt.s32.totalorder %v75, 1
    %vm95 = vcmp.lt.s32.totalorder %v75, 2
    %vm96 = vcmp.lt.s32.totalorder %v75, 3
    %vm97 = vcmp.lt.s32.totalorder %v75, 4
    %v98 = vsel %vm94, %v78, %v81
    %v99 = vsel %vm97, %v87, 2102212464
    %v100 = vsel %vm96, %v84, %v99
    %v101 = vsel %vm95, %v98, %v100
    %v102 = vsel %vm94, %v81, %v84
    %v103 = vsel %vm97, %v90, 920167782
    %v104 = vsel %vm96, %v87, %v103
    %v105 = vsel %vm95, %v102, %v104
    %v106 = vsel %vm94, %v84, %v87
    %v107 = vsel %vm97, %v93, 1326507024
    %v108 = vsel %vm96, %v90, %v107
    %v109 = vsel %vm95, %v106, %v108
    %v110 = vshll.u32 %v70, 8
    %v111 = vmul.u32.u64.compose %v110, %v109
    %v112 = vextract.low.u32 %v111
    %v113 = vextract.high.u32 %v111
    %v114 = vmul.u32.u64.compose %v110, %v105
    %v115 = vextract.low.u32 %v114
    %v116 = vextract.high.u32 %v114
    %v117 = vmul.u32 %v110, %v101
    %v118 = vadd.s32 %v113, %v115
    %vm119 = vc.u32 %v113, %v115
    %v120 = vadd.s32 %v116, 1
    %v121 = vsel %vm119, %v120, %v116
    %v122 = vadd.s32 %v117, %v121
    %v123 = vadd.s32 %v122, 536870912
    %v124 = vshrl.u32 %v123, 30
    %v125 = vshll.u32 %v124, 30
    %v126 = vsub.s32 %v122, %v125
    %vm127 = vcmp.lt.s32.totalorder %v126, 0
    %v128 = vsub.s32 0, %v126
    %v129 = vsel %vm127, %v128, %v126
    %v130 = vclz %v129
    %v131 = vsub.s32 %v130, 2
    %vm132 = vcmp.gt.s32.totalorder 0, %v131
    %v133 = vsel %vm132, 0, %v131
    %v134 = vsub.s32 32, %v133
    %v135 = vshll.u32 %v126, %v133
    %v136 = vshrl.u32 %v118, %v134
    %v137 = vor.u32 %v135, %v136
    %v138 = vsub.s32 4294967266, %v133
    %v139 = vadd.s32 %v138, 127
    %v140 = vshll.u32 %v139, 23
    %v141 = vor.u32 4788187, %v140
    %v142 = vand.u32 2147483647, %v141
    %v144 = vcvt.s32.f32 %v137
    %v145 = vmul.f32 %v144, %v142
    %v146 = vxor.u32 %v145, 2147483648
    %v147 = vsel %vm64, %v146, %v145
    %v148 = vsub.s32 4, %v124
    %v149 = vsel %vm64, %v148, %v124
    %v150 = vsel %vm63, %v60, %v147
    %v151 = vsel %vm63, 0, %v149
    %v152 = vcosq.f32.pop %v150
    %v153 = vsinq.f32.pop %v150
    %vm154 = vweird.f32 %v60
    %v155 = vadd.s32 %v151, 3
    %v156 = vand.u32 %v155, 3
    %vm157 = vcmp.lt.s32.totalorder %v156, 2
    %vm158 = vcmp.eq.s32.totalorder %v156, 0
    %v159 = vxor.u32 %v153, 2147483648
    %v160 = vsel %vm158, %v152, %v159
    %vm161 = vcmp.eq.s32.totalorder %v156, 2
    %v162 = vxor.u32 %v152, 2147483648
    %v163 = vsel %vm161, %v162, %v153
    %v164 = vsel %vm157, %v160, %v163
    %v165 = vsel %vm154, nan, %v164
    %v166 = vand.u32 2147483647, %v61
    %vm167 = vcmp.le.f32.partialorder %v166, 0.7853982
    %vm168 = vcmp.lt.s32.totalorder %v61, 0
    %v169 = vand.u32 %v61, 2139095040
    %v170 = vshrl.u32 %v169, 23
    %v171 = vsub.s32 %v170, 127
    %v172 = vand.u32 2147483647, %v61
    %v173 = vand.u32 %v172, 8388607
    %v174 = vor.u32 %v173, 8388608
    %v175 = vsub.s32 0, %v174
    %v176 = vadd.s32 %v171, 1
    %vm177 = vcmp.gt.s32.totalorder %v176, 0
    %v178 = vsel %vm177, %v176, 0
    %v179 = vshrl.u32 %v178, 5
    %v180 = vand.u32 %v178, 31
    %v181 = vsub.s32 32, %v180
    %v182 = vshrl.u32 683565275, %v181
    %v183 = vshll.u32 683565275, %v180
    %v184 = vshrl.u32 2475754826, %v181
    %v185 = vor.u32 %v183, %v184
    %v186 = vshll.u32 2475754826, %v180
    %v187 = vshrl.u32 2131351028, %v181
    %v188 = vor.u32 %v186, %v187
    %v189 = vshll.u32 2131351028, %v180
    %v190 = vshrl.u32 2102212464, %v181
    %v191 = vor.u32 %v189, %v190
    %v192 = vshll.u32 2102212464, %v180
    %v193 = vshrl.u32 920167782, %v181
    %v194 = vor.u32 %v192, %v193
    %v195 = vshll.u32 920167782, %v180
    %v196 = vshrl.u32 1326507024, %v181
    %v197 = vor.u32 %v195, %v196
    %vm198 = vcmp.lt.s32.totalorder %v179, 1
    %vm199 = vcmp.lt.s32.totalorder %v179, 2
    %vm200 = vcmp.lt.s32.totalorder %v179, 3
    %vm201 = vcmp.lt.s32.totalorder %v179, 4
    %v202 = vsel %vm198, %v182, %v185
    %v203 = vsel %vm201, %v191, 2102212464
    %v204 = vsel %vm200, %v188, %v203
    %v205 = vsel %vm199, %v202, %v204
    %v206 = vsel %vm198, %v185, %v188
    %v207 = vsel %vm201, %v194, 920167782
    %v208 = vsel %vm200, %v191, %v207
    %v209 = vsel %vm199, %v206, %v208
    %v210 = vsel %vm198, %v188, %v191
    %v211 = vsel %vm201, %v197, 1326507024
    %v212 = vsel %vm200, %v194, %v211
    %v213 = vsel %vm199, %v210, %v212
    %v214 = vshll.u32 %v174, 8
    %v215 = vmul.u32.u64.compose %v214, %v213
    %v216 = vextract.low.u32 %v215
    %v217 = vextract.high.u32 %v215
    %v218 = vmul.u32.u64.compose %v214, %v209
    %v219 = vextract.low.u32 %v218
    %v220 = vextract.high.u32 %v218
    %v221 = vmul.u32 %v214, %v205
    %v222 = vadd.s32 %v217, %v219
    %vm223 = vc.u32 %v217, %v219
    %v224 = vadd.s32 %v220, 1
    %v225 = vsel %vm223, %v224, %v220
    %v226 = vadd.s32 %v221, %v225
    %v227 = vadd.s32 %v226, 536870912
    %v228 = vshrl.u32 %v227, 30
    %v229 = vshll.u32 %v228, 30
    %v230 = vsub.s32 %v226, %v229
    %vm231 = vcmp.lt.s32.totalorder %v230, 0
    %v232 = vsub.s32 0, %v230
    %v233 = vsel %vm231, %v232, %v230
    %v234 = vclz %v233
    %v235 = vsub.s32 %v234, 2
    %vm236 = vcmp.gt.s32.totalorder 0, %v235
    %v237 = vsel %vm236, 0, %v235
    %v238 = vsub.s32 32, %v237
    %v239 = vshll.u32 %v230, %v237
    %v240 = vshrl.u32 %v222, %v238
    %v241 = vor.u32 %v239, %v240
    %v242 = vsub.s32 4294967266, %v237
    %v243 = vadd.s32 %v242, 127
    %v244 = vshll.u32 %v243, 23
    %v245 = vor.u32 4788187, %v244
    %v246 = vand.u32 2147483647, %v245
    %v248 = vcvt.s32.f32 %v241
    %v249 = vmul.f32 %v248, %v246
    %v250 = vxor.u32 %v249, 2147483648
    %v251 = vsel %vm168, %v250, %v249
    %v252 = vsub.s32 4, %v228
    %v253 = vsel %vm168, %v252, %v228
    %v254 = vsel %vm167, %v61, %v251
    %v255 = vsel %vm167, 0, %v253
    %v256 = vcosq.f32.pop %v254
    %v257 = vsinq.f32.pop %v254
    %vm258 = vweird.f32 %v61
    %v259 = vadd.s32 %v255, 3
    %v260 = vand.u32 %v259, 3
    %vm261 = vcmp.lt.s32.totalorder %v260, 2
    %vm262 = vcmp.eq.s32.totalorder %v260, 0
    %v263 = vxor.u32 %v257, 2147483648
    %v264 = vsel %vm262, %v256, %v263
    %vm265 = vcmp.eq.s32.totalorder %v260, 2
    %v266 = vxor.u32 %v256, 2147483648
    %v267 = vsel %vm265, %v266, %v257
    %v268 = vsel %vm261, %v264, %v267
    %v269 = vsel %vm258, nan, %v268
    %v270 = vand.u32 2147483647, %v165
    %v271 = vand.u32 2147483647, %v269
    %vm272 = vcmp.lt.f32.partialorder %v270, 1.0
    %vm273 = vcmp.lt.f32.partialorder %v271, 1.0
    %v274 = vmul.f32 %v270, %v270
    %v275 = vmul.f32 %v271, %v271
    %v276 = vmul.f32 %v274, 0.5
    %v277 = vmul.f32 %v275, 0.5
    %v278 = vsub.f32 %v270, 0.5
    %v279 = vsub.f32 %v271, 0.5
    %v280 = vsel %vm272, %v276, %v278
    %v281 = vsel %vm273, %v277, %v279
    %v284 = vcombine.high %v280, %v280
    %v286 = vunpack.c.l.s4 1983009808
    %v287 = vunpack.c.0.s8 %v286
    %v288 = vlaneseq
    %v289 = vshrl.u32 %v288, 7
    %v290 = vsub.s32 %v287, %v289
    %v291 = vrot.slane %v280, %v290
    %v293 = vunpack.c.l.s4 1983009808
    %v294 = vunpack.c.0.s8 %v293
    %v295 = vlaneseq
    %v296 = vshrl.u32 %v295, 7
    %v297 = vsub.s32 %v294, %v296
    %v298 = vrot.slane %v284, %v297
    %v299 = vcombine.high %v291, %v291
    %v300 = vcombine.high %v298, %v298
    %v301 = vcombine.high %v281, %v281
    %v303 = vunpack.c.l.s4 1983009808
    %v304 = vunpack.c.0.s8 %v303
    %v305 = vlaneseq
    %v306 = vshrl.u32 %v305, 7
    %v307 = vsub.s32 %v304, %v306
    %v308 = vrot.slane %v281, %v307
    %v310 = vunpack.c.l.s4 1983009808
    %v311 = vunpack.c.0.s8 %v310
    %v312 = vlaneseq
    %v313 = vshrl.u32 %v312, 7
    %v314 = vsub.s32 %v311, %v313
    %v315 = vrot.slane %v301, %v314
    %v316 = vcombine.high %v308, %v308
    %v317 = vcombine.high %v315, %v315
    %v326 = vadd.f32 %v48, %v291
    %v327 = vadd.f32 %v49, %v299
    %v328 = vadd.f32 %v50, %v298
    %v329 = vadd.f32 %v51, %v300
    %v330 = vadd.f32 %v52, %v308
    %v331 = vadd.f32 %v53, %v316
    %v332 = vadd.f32 %v54, %v315
    %v333 = vadd.f32 %v55, %v317
    %334 = vst [vmem:[#allocation2] sm:$0x3] %v326
    %335 = vst [vmem:[#allocation2 + $0x8] sm:$0x3] %v327
    %336 = vst [vmem:[#allocation2 + $0x10] sm:$0x3] %v328
    %337 = vst [vmem:[#allocation2 + $0x18] sm:$0x3] %v329
    %338 = vst [vmem:[#allocation2 + $0x20] sm:$0x3] %v330
    %339 = vst [vmem:[#allocation2 + $0x28] sm:$0x3] %v331
    %340 = vst [vmem:[#allocation2 + $0x30] sm:$0x3] %v332
    %341 = vst [vmem:[#allocation2 + $0x38] sm:$0x3] %v333
    // Predicated region
    $region22: #{tpu_custom_call.1} parent=1 // pred_check
      %p342 = pneg %p36
    $region23: #{tpu_custom_call.1} parent=1 // pred_check_branch
      %344 = sbr.rel (%p342) target = $region25
    $region24: #{tpu_custom_call.1} parent=1 // pred_region
      %v345 = vld [vmem:[#allocation2] sm:$0xff]
      %v346 = vld [vmem:[#allocation2 + $0x8] sm:$0xff]
      %v347 = vld [vmem:[#allocation2 + $0x10] sm:$0xff]
      %v348 = vld [vmem:[#allocation2 + $0x18] sm:$0xff]
      %v349 = vld [vmem:[#allocation2 + $0x20] sm:$0xff]
      %v350 = vld [vmem:[#allocation2 + $0x28] sm:$0xff]
      %v351 = vld [vmem:[#allocation2 + $0x30] sm:$0xff]
      %v352 = vld [vmem:[#allocation2 + $0x38] sm:$0xff]
      %v353 = vadd.f32 %v345, %v346
      %v354 = vadd.f32 %v353, %v347
      %v355 = vadd.f32 %v354, %v348
      %v356 = vadd.f32 %v355, %v349
      %v357 = vadd.f32 %v356, %v350
      %v358 = vadd.f32 %v357, %v351
      %v359 = vadd.f32 %v358, %v352
      %360 = vadd.xlane.f32.xlu0 %v359
      %v361 = vpop.xlane.xlu0 %360
      %v362 = vrot.slane %v361, 4
      %v363 = vadd.f32 %v361, %v362
      %v364 = vrot.slane %v363, 2
      %v365 = vadd.f32 %v363, %v364
      %v366 = vrot.slane %v365, 1
      %v367 = vadd.f32 %v365, %v366
      %s368 = vtos %v367
      %v369 = vstv %s368
      %vm370 = vcmask 0
      %371 = vst.msk [vmem:[#allocation8] sm:$0x1] %vm370, %v369
    $region25: #{tpu_custom_call.1} parent=1 // pred_fallthru
      _
    // Predicated region
    $region26: #{tpu_custom_call.1} parent=1 // pred_check
      _
    $region27: #{tpu_custom_call.1} parent=1 // pred_check_branch
      %373 = sbr.rel (0) target = $region29
    $region28: #{tpu_custom_call.1} parent=1 // pred_region
      %s375 = ssub.s32 16, 16
      %376 = vsyncadd [#allocation5], %s375
      %s378 = sshll.u32 [#allocation8], 4
      %s379 = int_to_ptr.vmem [resolvable:$true] %s378
      %381 = dma.vmem_to_hbm [thread:$0]  %s379, 16, %s2, [#allocation5]
    $region29: #{tpu_custom_call.1} parent=1 // pred_fallthru
      _
    // Predicated region
    $region30: #{tpu_custom_call.1} parent=1 // pred_check
      _
    $region31: #{tpu_custom_call.1} parent=1 // pred_check_branch
      %383 = sbr.rel (0) target = $region33
    $region32: #{tpu_custom_call.1} parent=1 // pred_region
      %384 = dma.done [#allocation5], 16
    $region33: #{tpu_custom_call.1} parent=1 // pred_fallthru
      _
    %385 = vsyncpa [#allocation4], 1
    %386 = vsyncpa [#allocation7], 1
    %387 = vsyncpa [#allocation5], 1

</llo_original>
